<compile_context>
chip_gen: v5e
topology: v5e:2x2
jax: 0.10.0
libtpu: 0.0.40
codegen_flags: <defaults>
</compile_context>

<pallas_src>
import functools

import jax
import jax.numpy as jnp
from jax.experimental import pallas as pl
from jax.experimental.pallas import tpu as pltpu


# ----------------------------------------------------------------------------
# In-kernel helpers
# ----------------------------------------------------------------------------
def _maxpool2x2(a, cs_even, cs_odd):
    """2x2 / stride-2 max-pool of `a` laid out as (Ho, Wo*C).

    Row decimation: two 0/1 selection matmuls built from a 2-D iota.
    Column decimation: precomputed 0/1 selectors (Wo*C, (Wo//2)*C).
    Returns (Ho//2, (Wo//2)*C).  Exact (each matmul row is a single-term sum).
    """
    f32 = jnp.float32
    ho = a.shape[0]
    hp = ho // 2
    ri = jax.lax.broadcasted_iota(jnp.int32, (hp, ho), 0)
    ci = jax.lax.broadcasted_iota(jnp.int32, (hp, ho), 1)
    rs_even = (ci == 2 * ri).astype(f32)
    rs_odd = (ci == 2 * ri + 1).astype(f32)
    r = jnp.maximum(jnp.dot(rs_even, a, preferred_element_type=f32),
                    jnp.dot(rs_odd, a, preferred_element_type=f32))
    return jnp.maximum(jnp.dot(r, cs_even, preferred_element_type=f32),
                       jnp.dot(r, cs_odd, preferred_element_type=f32))


def _net2_kernel(x_ref, t1_ref, b1_ref, t2_ref, b2_ref, cs1_ref, cs2_ref,
                 out_ref, *, ksize):
    """One batch element per grid step.

    x_ref  : (1, H, W*Cin)               input rows, (w, ci) interleaved lanes
    t1_ref : (KH*W*Cin,  Wo1*C1)         conv1 as width-Toeplitz matrix
    b1_ref : (1, Wo1*C1)                 conv1 bias tiled over wo
    t2_ref : (KH*Wp1*C1, Wo2*C2)         conv2 as width-Toeplitz matrix
    b2_ref : (1, Wo2*C2)                 conv2 bias tiled over wo
    cs1_ref: (2, Wo1*C1, Wp1*C1)         pool1 column selectors (even/odd)
    cs2_ref: (2, Wo2*C2, Wp2*C2)         pool2 column selectors (even/odd)
    out_ref: (1, Hp2, Wp2*C2)            output rows, (w, c) interleaved lanes
    """
    f32 = jnp.float32
    h = x_ref.shape[1]
    ho1 = h - ksize + 1
    hp1 = ho1 // 2
    ho2 = hp1 - ksize + 1

    x = x_ref[0].astype(f32)                                     # (H, W*Cin)

    # ---- conv1: KH shifted row-bands -> one MXU matmul + bias --------------
    x1 = jnp.concatenate([x[kh:kh + ho1, :] for kh in range(ksize)], axis=1)
    acc1 = jnp.dot(x1, t1_ref[...], preferred_element_type=f32) + b1_ref[...]
    # sigmoid: exp and approximate reciprocal both live on the EUP slot.
    act1 = pl.reciprocal(1.0 + jnp.exp(-acc1), approx=True)      # (Ho1, Wo1*C1)

    # ---- maxpool 2x2 (vectorized, stays in registers) ----------------------
    p1 = _maxpool2x2(act1, cs1_ref[0], cs1_ref[1])               # (Hp1, Wp1*C1)

    # ---- conv2: KH shifted row-bands -> one MXU matmul + bias + relu -------
    x2 = jnp.concatenate([p1[kh:kh + ho2, :] for kh in range(ksize)], axis=1)
    acc2 = jnp.dot(x2, t2_ref[...], preferred_element_type=f32) + b2_ref[...]
    act2 = jnp.maximum(acc2, 0.0)                                # (Ho2, Wo2*C2)

    # ---- maxpool 2x2 -> single whole-tile store -----------------------------
    out_ref[0] = _maxpool2x2(act2, cs2_ref[0], cs2_ref[1])       # (Hp2, Wp2*C2)


# ----------------------------------------------------------------------------
# Wrapper-side constant builders (run once in XLA, all tiny)
# ----------------------------------------------------------------------------
def _conv_as_matmul_weights(w_hwio, w_in):
    """(KH,KW,Cin,Cout) conv weight -> (KH*w_in*Cin, Wo*Cout) Toeplitz matrix.

    With X[ho, kh*(w_in*Cin) + w*Cin + ci] = img[ho+kh, w, ci],
    X @ T equals the VALID cross-correlation; columns laid out as wo*Cout+co.
    """
    kh_sz, kw_sz, cin, cout = w_hwio.shape
    wo = w_in - kw_sz + 1
    kw_idx = jnp.arange(w_in)[:, None] - jnp.arange(wo)[None, :]   # (w_in, wo)
    valid = (kw_idx >= 0) & (kw_idx < kw_sz)
    kw_c = jnp.clip(kw_idx, 0, kw_sz - 1)
    g = w_hwio[:, kw_c, :, :]                       # (KH, w_in, wo, Cin, Cout)
    g = jnp.where(valid[None, :, :, None, None], g, 0.0)
    g = jnp.transpose(g, (0, 1, 3, 2, 4))           # (KH, w_in, Cin, wo, Cout)
    return g.reshape(kh_sz * w_in * cin, wo * cout).astype(jnp.float32)


def _pool_col_selectors(wo, c):
    """0/1 selectors (2, wo*c, (wo//2)*c) picking even / odd wo column groups."""
    wp = wo // 2
    k = jnp.arange(wo * c)[:, None]
    j = jnp.arange(wp * c)[None, :]
    src_even = 2 * c * (j // c) + (j % c)
    s_even = (k == src_even).astype(jnp.float32)
    s_odd = (k == src_even + c).astype(jnp.float32)
    return jnp.stack([s_even, s_odd], axis=0)


# ----------------------------------------------------------------------------
# Forward pass (NCHW in, NCHW out -- matches the PyTorch module)
# ----------------------------------------------------------------------------
@jax.jit
def net2_forward(x_nchw, w1, b1, w2, b2):
    x_nchw = x_nchw.astype(jnp.float32)
    B, cin, H, W = x_nchw.shape
    kh_sz, kw_sz, _, c1 = w1.shape
    c2 = w2.shape[-1]

    ho1, wo1 = H - kh_sz + 1, W - kw_sz + 1
    hp1, wp1 = ho1 // 2, wo1 // 2
    ho2, wo2 = hp1 - kh_sz + 1, wp1 - kw_sz + 1
    hp2, wp2 = ho2 // 2, wo2 // 2

    # Layout + constant matrices (wrapper-side, one-time).
    x_rows = jnp.transpose(x_nchw, (0, 2, 3, 1)).reshape(B, H, W * cin)
    t1 = _conv_as_matmul_weights(w1.astype(jnp.float32), W)     # (KH*W*Cin, Wo1*C1)
    t2 = _conv_as_matmul_weights(w2.astype(jnp.float32), wp1)   # (KH*Wp1*C1, Wo2*C2)
    b1_t = jnp.tile(b1.reshape(1, c1).astype(jnp.float32), (1, wo1))
    b2_t = jnp.tile(b2.reshape(1, c2).astype(jnp.float32), (1, wo2))
    cs1 = _pool_col_selectors(wo1, c1)                          # (2, Wo1*C1, Wp1*C1)
    cs2 = _pool_col_selectors(wo2, c2)                          # (2, Wo2*C2, Wp2*C2)

    kernel = functools.partial(_net2_kernel, ksize=kh_sz)

    out = pl.pallas_call(
        kernel,
        out_shape=jax.ShapeDtypeStruct((B, hp2, wp2 * c2), jnp.float32),
        grid=(B,),
        in_specs=[
            pl.BlockSpec((1, H, W * cin), lambda b: (b, 0, 0)),
            pl.BlockSpec(t1.shape, lambda b: (0, 0)),
            pl.BlockSpec(b1_t.shape, lambda b: (0, 0)),
            pl.BlockSpec(t2.shape, lambda b: (0, 0)),
            pl.BlockSpec(b2_t.shape, lambda b: (0, 0)),
            pl.BlockSpec(cs1.shape, lambda b: (0, 0, 0)),
            pl.BlockSpec(cs2.shape, lambda b: (0, 0, 0)),
        ],
        out_specs=pl.BlockSpec((1, hp2, wp2 * c2), lambda b: (b, 0, 0)),
        compiler_params=pltpu.CompilerParams(
            dimension_semantics=("parallel",),
            vmem_limit_bytes=32 * 1024 * 1024),
    )(x_rows, t1, b1_t, t2, b2_t, cs1, cs2)

    # (B, Hp2, Wp2*C2) -> NHWC -> NCHW
    return jnp.transpose(out.reshape(B, hp2, wp2, c2), (0, 3, 1, 2))


# ----------------------------------------------------------------------------
# Pure-JAX (XLA) reference + params
# ----------------------------------------------------------------------------
def net2_reference(x_nchw, w1, b1, w2, b2):
    def conv(x, w, b):
        y = jax.lax.conv_general_dilated(
            x, w, window_strides=(1, 1), padding="VALID",
            dimension_numbers=("NCHW", "HWIO", "NCHW"))
        return y + b.reshape(1, -1, 1, 1)

    def pool(x):
        return jax.lax.reduce_window(
            x, -jnp.inf, jax.lax.max, (1, 1, 2, 2), (1, 1, 2, 2), "VALID")

    h = pool(jax.nn.sigmoid(conv(x_nchw, w1, b1)))
    h = pool(jnp.maximum(conv(h, w2, b2), 0.0))
    return h


def init_params(key):
    k1, k2, k3, k4 = jax.random.split(key, 4)

    def conv_init(kw_key, kb_key, kh, kwid, cin, cout):
        fan_in = cin * kh * kwid
        bound = 1.0 / jnp.sqrt(fan_in)
        w = jax.random.uniform(kw_key, (kh, kwid, cin, cout),
                               jnp.float32, -bound, bound)
        b = jax.random.uniform(kb_key, (1, cout), jnp.float32, -bound, bound)
        return w, b

    w1, b1 = conv_init(k1, k2, 5, 5, 1, 6)    # Conv2dCOB(1, 6, 5)
    w2, b2 = conv_init(k3, k4, 5, 5, 6, 16)   # Conv2dCOB(6, 16, 5)
    return w1, b1, w2, b2


if __name__ == "__main__":
    key = jax.random.PRNGKey(0)
    kx, kp = jax.random.split(key)

    # NCHW input, 1 channel, spatial 16 (conv1->12, pool->6, conv2->2, pool->1)
    x = jax.random.normal(kx, (2, 1, 16, 16), jnp.float32)
    w1, b1, w2, b2 = init_params(kp)

    out = net2_forward(x, w1, b1, w2, b2)
    out = jax.block_until_ready(out)

    ref = net2_reference(x, w1, b1, w2, b2)
    assert out.shape == ref.shape == (2, 16, 1, 1), (out.shape, ref.shape)
    # 5e-3 tolerance: sigmoid uses the EUP approximate reciprocal (~2^-12 rel),
    # amplified by the 150-term conv2 sum; everything else is exact f32.
    assert jnp.allclose(out, ref, atol=5e-3, rtol=5e-3), "mismatch vs reference"

    print("KERNEL_OK")
</pallas_src>

<mosaic_0001>
module attributes {stable_mosaic.version = 11 : i64} {
  func.func @_net2_kernel(%arg0: i32, %arg1: memref<1x16x16xf32, #tpu.memory_space<vmem>>, %arg2: memref<80x72xf32, #tpu.memory_space<vmem>>, %arg3: memref<1x72xf32, #tpu.memory_space<vmem>>, %arg4: memref<180x32xf32, #tpu.memory_space<vmem>>, %arg5: memref<1x32xf32, #tpu.memory_space<vmem>>, %arg6: memref<2x72x36xf32, #tpu.memory_space<vmem>>, %arg7: memref<2x32x16xf32, #tpu.memory_space<vmem>>, %arg8: memref<1x1x16xf32, #tpu.memory_space<vmem>>) attributes {dimension_semantics = [#tpu.dimension_semantics<parallel>], iteration_bounds = array<i64: 2>, scalar_prefetch = 0 : i64, scratch_operands = 0 : i64, tpu.core_type = #tpu.core_type<tc>, window_params = [{transform_indices = @transform_0, window_bounds = array<i64: 1, 16, 16>}, {pipeline_mode = #tpu.pipeline_mode<synchronous>, transform_indices = @transform_1, window_bounds = array<i64: 80, 72>}, {pipeline_mode = #tpu.pipeline_mode<synchronous>, transform_indices = @transform_2, window_bounds = array<i64: 1, 72>}, {pipeline_mode = #tpu.pipeline_mode<synchronous>, transform_indices = @transform_3, window_bounds = array<i64: 180, 32>}, {pipeline_mode = #tpu.pipeline_mode<synchronous>, transform_indices = @transform_4, window_bounds = array<i64: 1, 32>}, {pipeline_mode = #tpu.pipeline_mode<synchronous>, transform_indices = @transform_5, window_bounds = array<i64: 2, 72, 36>}, {pipeline_mode = #tpu.pipeline_mode<synchronous>, transform_indices = @transform_6, window_bounds = array<i64: 2, 32, 16>}, {transform_indices = @transform_7, window_bounds = array<i64: 1, 1, 16>}]} {
    %c0 = arith.constant 0 : index
    %c0_0 = arith.constant 0 : index
    %c0_1 = arith.constant 0 : index
    %0 = vector.load %arg1[%c0, %c0_0, %c0_1] : memref<1x16x16xf32, #tpu.memory_space<vmem>>, vector<1x16x16xf32>
    %1 = vector.shape_cast %0 : vector<1x16x16xf32> to vector<16x16xf32>
    %2 = vector.extract_strided_slice %1 {offsets = [0, 0], sizes = [12, 16], strides = [1, 1]} : vector<16x16xf32> to vector<12x16xf32>
    %3 = vector.extract_strided_slice %1 {offsets = [1, 0], sizes = [12, 16], strides = [1, 1]} : vector<16x16xf32> to vector<12x16xf32>
    %4 = vector.extract_strided_slice %1 {offsets = [2, 0], sizes = [12, 16], strides = [1, 1]} : vector<16x16xf32> to vector<12x16xf32>
    %5 = vector.extract_strided_slice %1 {offsets = [3, 0], sizes = [12, 16], strides = [1, 1]} : vector<16x16xf32> to vector<12x16xf32>
    %6 = vector.extract_strided_slice %1 {offsets = [4, 0], sizes = [12, 16], strides = [1, 1]} : vector<16x16xf32> to vector<12x16xf32>
    %7 = tpu.concatenate %2, %3, %4, %5, %6 in 1 : vector<12x16xf32>, vector<12x16xf32>, vector<12x16xf32>, vector<12x16xf32>, vector<12x16xf32> -> vector<12x80xf32>
    %c0_2 = arith.constant 0 : index
    %c0_3 = arith.constant 0 : index
    %8 = vector.load %arg2[%c0_2, %c0_3] : memref<80x72xf32, #tpu.memory_space<vmem>>, vector<80x72xf32>
    %cst = arith.constant dense<0.000000e+00> : vector<12x72xf32>
    %9 = tpu.matmul %7, %8, %cst {dimension_numbers = #tpu.dot_dimension_numbers<[1], [0], [0], [1], [0, 0, 1, 1], [], []>} : vector<12x80xf32>, vector<80x72xf32>, vector<12x72xf32> -> vector<12x72xf32>
    %c0_4 = arith.constant 0 : index
    %c0_5 = arith.constant 0 : index
    %10 = vector.load %arg3[%c0_4, %c0_5] : memref<1x72xf32, #tpu.memory_space<vmem>>, vector<1x72xf32>
    %11 = vector.broadcast %10 : vector<1x72xf32> to vector<12x72xf32>
    %12 = arith.addf %9, %11 : vector<12x72xf32>
    %cst_6 = arith.constant 0.000000e+00 : f32
    %13 = vector.broadcast %cst_6 : f32 to vector<12x72xf32>
    %14 = arith.subf %13, %12 : vector<12x72xf32>
    %15 = math.exp %14 : vector<12x72xf32>
    %cst_7 = arith.constant 1.000000e+00 : f32
    %16 = vector.broadcast %cst_7 : f32 to vector<12x72xf32>
    %17 = arith.addf %16, %15 : vector<12x72xf32>
    %18 = tpu.reciprocal %17 {approx = true} : vector<12x72xf32> -> vector<12x72xf32>
    %c0_8 = arith.constant 0 : index
    %c0_9 = arith.constant 0 : index
    %c0_10 = arith.constant 0 : index
    %19 = vector.load %arg6[%c0_8, %c0_9, %c0_10] : memref<2x72x36xf32, #tpu.memory_space<vmem>>, vector<1x72x36xf32>
    %20 = vector.shape_cast %19 : vector<1x72x36xf32> to vector<72x36xf32>
    %c1 = arith.constant 1 : index
    %c0_11 = arith.constant 0 : index
    %c0_12 = arith.constant 0 : index
    %21 = vector.load %arg6[%c1, %c0_11, %c0_12] : memref<2x72x36xf32, #tpu.memory_space<vmem>>, vector<1x72x36xf32>
    %22 = vector.shape_cast %21 : vector<1x72x36xf32> to vector<72x36xf32>
    %23 = tpu.iota {dimensions = array<i32: 0>} : vector<6x12xi32>
    %24 = tpu.iota {dimensions = array<i32: 1>} : vector<6x12xi32>
    %c2_i32 = arith.constant 2 : i32
    %25 = vector.broadcast %c2_i32 : i32 to vector<6x12xi32>
    %26 = arith.muli %25, %23 : vector<6x12xi32>
    %27 = arith.cmpi eq, %24, %26 : vector<6x12xi32>
    %28 = arith.extui %27 : vector<6x12xi1> to vector<6x12xi32>
    %29 = arith.sitofp %28 : vector<6x12xi32> to vector<6x12xf32>
    %c2_i32_13 = arith.constant 2 : i32
    %30 = vector.broadcast %c2_i32_13 : i32 to vector<6x12xi32>
    %31 = arith.muli %30, %23 : vector<6x12xi32>
    %c1_i32 = arith.constant 1 : i32
    %32 = vector.broadcast %c1_i32 : i32 to vector<6x12xi32>
    %33 = arith.addi %31, %32 : vector<6x12xi32>
    %34 = arith.cmpi eq, %24, %33 : vector<6x12xi32>
    %35 = arith.extui %34 : vector<6x12xi1> to vector<6x12xi32>
    %36 = arith.sitofp %35 : vector<6x12xi32> to vector<6x12xf32>
    %cst_14 = arith.constant dense<0.000000e+00> : vector<6x72xf32>
    %37 = tpu.matmul %29, %18, %cst_14 {dimension_numbers = #tpu.dot_dimension_numbers<[1], [0], [0], [1], [0, 0, 1, 1], [], []>} : vector<6x12xf32>, vector<12x72xf32>, vector<6x72xf32> -> vector<6x72xf32>
    %cst_15 = arith.constant dense<0.000000e+00> : vector<6x72xf32>
    %38 = tpu.matmul %36, %18, %cst_15 {dimension_numbers = #tpu.dot_dimension_numbers<[1], [0], [0], [1], [0, 0, 1, 1], [], []>} : vector<6x12xf32>, vector<12x72xf32>, vector<6x72xf32> -> vector<6x72xf32>
    %39 = arith.maximumf %37, %38 : vector<6x72xf32>
    %cst_16 = arith.constant dense<0.000000e+00> : vector<6x36xf32>
    %40 = tpu.matmul %39, %20, %cst_16 {dimension_numbers = #tpu.dot_dimension_numbers<[1], [0], [0], [1], [0, 0, 1, 1], [], []>} : vector<6x72xf32>, vector<72x36xf32>, vector<6x36xf32> -> vector<6x36xf32>
    %cst_17 = arith.constant dense<0.000000e+00> : vector<6x36xf32>
    %41 = tpu.matmul %39, %22, %cst_17 {dimension_numbers = #tpu.dot_dimension_numbers<[1], [0], [0], [1], [0, 0, 1, 1], [], []>} : vector<6x72xf32>, vector<72x36xf32>, vector<6x36xf32> -> vector<6x36xf32>
    %42 = arith.maximumf %40, %41 : vector<6x36xf32>
    %43 = vector.extract_strided_slice %42 {offsets = [0, 0], sizes = [2, 36], strides = [1, 1]} : vector<6x36xf32> to vector<2x36xf32>
    %44 = vector.extract_strided_slice %42 {offsets = [1, 0], sizes = [2, 36], strides = [1, 1]} : vector<6x36xf32> to vector<2x36xf32>
    %45 = vector.extract_strided_slice %42 {offsets = [2, 0], sizes = [2, 36], strides = [1, 1]} : vector<6x36xf32> to vector<2x36xf32>
    %46 = vector.extract_strided_slice %42 {offsets = [3, 0], sizes = [2, 36], strides = [1, 1]} : vector<6x36xf32> to vector<2x36xf32>
    %47 = vector.extract_strided_slice %42 {offsets = [4, 0], sizes = [2, 36], strides = [1, 1]} : vector<6x36xf32> to vector<2x36xf32>
    %48 = tpu.concatenate %43, %44, %45, %46, %47 in 1 : vector<2x36xf32>, vector<2x36xf32>, vector<2x36xf32>, vector<2x36xf32>, vector<2x36xf32> -> vector<2x180xf32>
    %c0_18 = arith.constant 0 : index
    %c0_19 = arith.constant 0 : index
    %49 = vector.load %arg4[%c0_18, %c0_19] : memref<180x32xf32, #tpu.memory_space<vmem>>, vector<180x32xf32>
    %cst_20 = arith.constant dense<0.000000e+00> : vector<2x32xf32>
    %50 = tpu.matmul %48, %49, %cst_20 {dimension_numbers = #tpu.dot_dimension_numbers<[1], [0], [0], [1], [0, 0, 1, 1], [], []>} : vector<2x180xf32>, vector<180x32xf32>, vector<2x32xf32> -> vector<2x32xf32>
    %c0_21 = arith.constant 0 : index
    %c0_22 = arith.constant 0 : index
    %51 = vector.load %arg5[%c0_21, %c0_22] : memref<1x32xf32, #tpu.memory_space<vmem>>, vector<1x32xf32>
    %52 = vector.broadcast %51 : vector<1x32xf32> to vector<2x32xf32>
    %53 = arith.addf %50, %52 : vector<2x32xf32>
    %cst_23 = arith.constant 0.000000e+00 : f32
    %54 = vector.broadcast %cst_23 : f32 to vector<2x32xf32>
    %55 = arith.maximumf %53, %54 : vector<2x32xf32>
    %c0_24 = arith.constant 0 : index
    %c0_25 = arith.constant 0 : index
    %c0_26 = arith.constant 0 : index
    %56 = vector.load %arg7[%c0_24, %c0_25, %c0_26] : memref<2x32x16xf32, #tpu.memory_space<vmem>>, vector<1x32x16xf32>
    %57 = vector.shape_cast %56 : vector<1x32x16xf32> to vector<32x16xf32>
    %c1_27 = arith.constant 1 : index
    %c0_28 = arith.constant 0 : index
    %c0_29 = arith.constant 0 : index
    %58 = vector.load %arg7[%c1_27, %c0_28, %c0_29] : memref<2x32x16xf32, #tpu.memory_space<vmem>>, vector<1x32x16xf32>
    %59 = vector.shape_cast %58 : vector<1x32x16xf32> to vector<32x16xf32>
    %60 = tpu.iota {dimensions = array<i32: 0>} : vector<1x2xi32>
    %61 = tpu.iota {dimensions = array<i32: 1>} : vector<1x2xi32>
    %c2_i32_30 = arith.constant 2 : i32
    %62 = vector.broadcast %c2_i32_30 : i32 to vector<1x2xi32>
    %63 = arith.muli %62, %60 : vector<1x2xi32>
    %64 = arith.cmpi eq, %61, %63 : vector<1x2xi32>
    %65 = arith.extui %64 : vector<1x2xi1> to vector<1x2xi32>
    %66 = arith.sitofp %65 : vector<1x2xi32> to vector<1x2xf32>
    %c2_i32_31 = arith.constant 2 : i32
    %67 = vector.broadcast %c2_i32_31 : i32 to vector<1x2xi32>
    %68 = arith.muli %67, %60 : vector<1x2xi32>
    %c1_i32_32 = arith.constant 1 : i32
    %69 = vector.broadcast %c1_i32_32 : i32 to vector<1x2xi32>
    %70 = arith.addi %68, %69 : vector<1x2xi32>
    %71 = arith.cmpi eq, %61, %70 : vector<1x2xi32>
    %72 = arith.extui %71 : vector<1x2xi1> to vector<1x2xi32>
    %73 = arith.sitofp %72 : vector<1x2xi32> to vector<1x2xf32>
    %cst_33 = arith.constant dense<0.000000e+00> : vector<1x32xf32>
    %74 = tpu.matmul %66, %55, %cst_33 {dimension_numbers = #tpu.dot_dimension_numbers<[1], [0], [0], [1], [0, 0, 1, 1], [], []>} : vector<1x2xf32>, vector<2x32xf32>, vector<1x32xf32> -> vector<1x32xf32>
    %cst_34 = arith.constant dense<0.000000e+00> : vector<1x32xf32>
    %75 = tpu.matmul %73, %55, %cst_34 {dimension_numbers = #tpu.dot_dimension_numbers<[1], [0], [0], [1], [0, 0, 1, 1], [], []>} : vector<1x2xf32>, vector<2x32xf32>, vector<1x32xf32> -> vector<1x32xf32>
    %76 = arith.maximumf %74, %75 : vector<1x32xf32>
    %cst_35 = arith.constant dense<0.000000e+00> : vector<1x16xf32>
    %77 = tpu.matmul %76, %57, %cst_35 {dimension_numbers = #tpu.dot_dimension_numbers<[1], [0], [0], [1], [0, 0, 1, 1], [], []>} : vector<1x32xf32>, vector<32x16xf32>, vector<1x16xf32> -> vector<1x16xf32>
    %cst_36 = arith.constant dense<0.000000e+00> : vector<1x16xf32>
    %78 = tpu.matmul %76, %59, %cst_36 {dimension_numbers = #tpu.dot_dimension_numbers<[1], [0], [0], [1], [0, 0, 1, 1], [], []>} : vector<1x32xf32>, vector<32x16xf32>, vector<1x16xf32> -> vector<1x16xf32>
    %79 = arith.maximumf %77, %78 : vector<1x16xf32>
    %c0_37 = arith.constant 0 : index
    %c0_38 = arith.constant 0 : index
    %c0_39 = arith.constant 0 : index
    %80 = vector.load %arg8[%c0_37, %c0_38, %c0_39] : memref<1x1x16xf32, #tpu.memory_space<vmem>>, vector<1x1x16xf32>
    %81 = vector.shape_cast %80 : vector<1x1x16xf32> to vector<1x16xf32>
    %82 = vector.shape_cast %79 : vector<1x16xf32> to vector<1x1x16xf32>
    tpu.vector_store %arg8[%c0_37, %c0_38, %c0_39], %82 {strides = array<i32>} : memref<1x1x16xf32, #tpu.memory_space<vmem>>, vector<1x1x16xf32>,
    return
  }
  func.func @transform_0(%arg0: i32) -> (i32, i32, i32) {
    %c0_i32 = arith.constant 0 : i32
    %c0_i32_0 = arith.constant 0 : i32
    %c0_i32_1 = arith.constant 0 : i32
    return %arg0, %c0_i32, %c0_i32_0 : i32, i32, i32
  }
  func.func @transform_1(%arg0: i32) -> (i32, i32) {
    %c0_i32 = arith.constant 0 : i32
    %c0_i32_0 = arith.constant 0 : i32
    %c0_i32_1 = arith.constant 0 : i32
    return %c0_i32, %c0_i32_0 : i32, i32
  }
  func.func @transform_2(%arg0: i32) -> (i32, i32) {
    %c0_i32 = arith.constant 0 : i32
    %c0_i32_0 = arith.constant 0 : i32
    %c0_i32_1 = arith.constant 0 : i32
    return %c0_i32, %c0_i32_0 : i32, i32
  }
  func.func @transform_3(%arg0: i32) -> (i32, i32) {
    %c0_i32 = arith.constant 0 : i32
    %c0_i32_0 = arith.constant 0 : i32
    %c0_i32_1 = arith.constant 0 : i32
    return %c0_i32, %c0_i32_0 : i32, i32
  }
  func.func @transform_4(%arg0: i32) -> (i32, i32) {
    %c0_i32 = arith.constant 0 : i32
    %c0_i32_0 = arith.constant 0 : i32
    %c0_i32_1 = arith.constant 0 : i32
    return %c0_i32, %c0_i32_0 : i32, i32
  }
  func.func @transform_5(%arg0: i32) -> (i32, i32, i32) {
    %c0_i32 = arith.constant 0 : i32
    %c0_i32_0 = arith.constant 0 : i32
    %c0_i32_1 = arith.constant 0 : i32
    %c0_i32_2 = arith.constant 0 : i32
    return %c0_i32, %c0_i32_0, %c0_i32_1 : i32, i32, i32
  }
  func.func @transform_6(%arg0: i32) -> (i32, i32, i32) {
    %c0_i32 = arith.constant 0 : i32
    %c0_i32_0 = arith.constant 0 : i32
    %c0_i32_1 = arith.constant 0 : i32
    %c0_i32_2 = arith.constant 0 : i32
    return %c0_i32, %c0_i32_0, %c0_i32_1 : i32, i32, i32
  }
  func.func @transform_7(%arg0: i32) -> (i32, i32, i32) {
    %c0_i32 = arith.constant 0 : i32
    %c0_i32_0 = arith.constant 0 : i32
    %c0_i32_1 = arith.constant 0 : i32
    return %arg0, %c0_i32, %c0_i32_0 : i32, i32, i32
  }
}

</mosaic_0001>

<llo_original>
// kernel: net2_forward.1
$region0: #{net2_forward.1}
  #allocation0 [shape = 'u32[]', space=smem, size = 0x4, offset = 0x4, fixed_abs, tag = 'smem constant byte address 0x4 - core index']
  #allocation1 [shape = 'u32[72,128]{1,0:T(1,128)}', space=vmem, size = 0x9000, scoped, tag = 'internal scratch']
  %s0 = inlined_call_operand.vmem [shape: f32[2,16,16], index: 0, kind: input, shape index: {}]
  %s1 = inlined_call_operand.vmem [shape: f32[80,72], index: 1, kind: input, shape index: {}]
  %s2 = inlined_call_operand.vmem [shape: f32[1,72], index: 2, kind: input, shape index: {}]
  %s3 = inlined_call_operand.vmem [shape: f32[180,32], index: 3, kind: input, shape index: {}]
  %s4 = inlined_call_operand.vmem [shape: f32[1,32], index: 4, kind: input, shape index: {}]
  %s5 = inlined_call_operand.vmem [shape: f32[2,72,36], index: 5, kind: input, shape index: {}]
  %s6 = inlined_call_operand.vmem [shape: f32[2,32,16], index: 6, kind: input, shape index: {}]
  %s7 = inlined_call_operand.hbm [shape: f32[2,1,16], index: 7, kind: output, shape index: {}]
  %s8 = sld [smem:[#allocation0]]
  $region61: #{net2_forward.1} parent=0
    _
  %s10 = ssub.s32 1, %s8
  %s11 = scalar_select 0, %s10, %s8
  $region1: #{net2_forward.1} parent=0
    #allocation2 [shape = 'u8[1024]{0}', space=vmem, size = 0x400, scoped, tag = 'output window, operand 0']
    #allocation3 [shape = 's32[2]{0}', space=sflag, size = 0x8, scoped, tag = 'scoped memory for net2_forward.1']
    %12 = vsyncpa [#allocation3], 0
    %s13 = scalar_lea.sflag [#allocation3], 1
    %14 = vsyncpa %s13, 0
    loop: start=0, step=1, limit=4
    $region2: #{net2_forward.1} parent=1 // loop_pre_header
      _
    $region3: #{net2_forward.1} parent=1 // loop_header
      %s16 = sphi 0, %s20
      %p17 = scmp.ge.s32.totalorder %s16, 4
      %s26 = sphi 0, %s28
      %s29 = sphi 0, %s26
      %s30 = sphi 0, %s29
      %s46 = sphi 0, %s30
      %s50 = sphi 0, %s50
      %s52 = sphi 0, %s50
      %s53 = sphi 0, %s52
      %s67 = sphi 0, %s53
      %s71 = sphi 0, %s71
      %s73 = sphi 0, %s71
      %s74 = sphi 0, %s73
      %s88 = sphi 0, %s74
      %s92 = sphi 0, %s92
      %s94 = sphi 0, %s92
      %s95 = sphi 0, %s94
      %s109 = sphi 0, %s95
      %s113 = sphi 0, %s113
      %s115 = sphi 0, %s113
      %s116 = sphi 0, %s115
      %s130 = sphi 0, %s116
      %s134 = sphi 0, %s134
      %s136 = sphi 0, %s134
      %s137 = sphi 0, %s136
      %s151 = sphi 0, %s137
      %s155 = sphi 0, %s155
      %s157 = sphi 0, %s155
      %s158 = sphi 0, %s157
      %s172 = sphi 0, %s158
      %s178 = sphi 0, %s180
      %s181 = sphi 0, %s178
      %s182 = sphi 0, %s181
      %s198 = sphi 0, %s182
    $region4: #{net2_forward.1} parent=1 // loop_header_branch
      %19 = sbr.rel (%p17) target = $region8
    $region5: #{net2_forward.1} parent=1 // loop_body
      %s21 = ssub.s32 %s16, 1
      %s22 = ssub.s32 %s16, 2
      %s23 = sadd.s32 %s16, 1
      %s24 = ssub.s32 %s16, %s23
      %p25 = scmp.eq.s32.totalorder %s24, 0
      %s27 = sadd.s32 %s26, 1
      %s28 = scalar_select %p25, %s26, %s27
      %p31 = pneg %p25
      %p32 = scmp.eq.s32.totalorder %s16, 1
      %p33 = por %p31, %p32
      %p34 = scmp.ne.s32.totalorder %s26, %s29
      %p35 = scmp.eq.s32.totalorder %s16, 0
      %p36 = por %p34, %p35
      %p37 = scmp.ne.s32.totalorder %s26, %s29
      %p38 = scmp.eq.s32.totalorder %s21, 1
      %p39 = por %p37, %p38
      %p40 = scmp.ne.s32.totalorder %s29, %s30
      %p41 = scmp.eq.s32.totalorder %s21, 0
      %p42 = por %p40, %p41
      %p43 = scmp.ne.s32.totalorder %s29, %s30
      %p44 = scmp.eq.s32.totalorder %s22, 1
      %p45 = por %p43, %p44
      %p47 = scmp.ne.s32.totalorder %s30, %s46
      %p48 = scmp.eq.s32.totalorder %s22, 0
      %p49 = por %p47, %p48
      %s51 = sadd.s32 %s50, 1
      %p54 = scmp.eq.s32.totalorder %s16, 1
      %p55 = scmp.ne.s32.totalorder %s50, %s52
      %p56 = scmp.eq.s32.totalorder %s16, 0
      %p57 = por %p55, %p56
      %p58 = scmp.ne.s32.totalorder %s50, %s52
      %p59 = scmp.eq.s32.totalorder %s21, 1
      %p60 = por %p58, %p59
      %p61 = scmp.ne.s32.totalorder %s52, %s53
      %p62 = scmp.eq.s32.totalorder %s21, 0
      %p63 = por %p61, %p62
      %p64 = scmp.ne.s32.totalorder %s52, %s53
      %p65 = scmp.eq.s32.totalorder %s22, 1
      %p66 = por %p64, %p65
      %p68 = scmp.ne.s32.totalorder %s53, %s67
      %p69 = scmp.eq.s32.totalorder %s22, 0
      %p70 = por %p68, %p69
      %s72 = sadd.s32 %s71, 1
      %p75 = scmp.eq.s32.totalorder %s16, 1
      %p76 = scmp.ne.s32.totalorder %s71, %s73
      %p77 = scmp.eq.s32.totalorder %s16, 0
      %p78 = por %p76, %p77
      %p79 = scmp.ne.s32.totalorder %s71, %s73
      %p80 = scmp.eq.s32.totalorder %s21, 1
      %p81 = por %p79, %p80
      %p82 = scmp.ne.s32.totalorder %s73, %s74
      %p83 = scmp.eq.s32.totalorder %s21, 0
      %p84 = por %p82, %p83
      %p85 = scmp.ne.s32.totalorder %s73, %s74
      %p86 = scmp.eq.s32.totalorder %s22, 1
      %p87 = por %p85, %p86
      %p89 = scmp.ne.s32.totalorder %s74, %s88
      %p90 = scmp.eq.s32.totalorder %s22, 0
      %p91 = por %p89, %p90
      %s93 = sadd.s32 %s92, 1
      %p96 = scmp.eq.s32.totalorder %s16, 1
      %p97 = scmp.ne.s32.totalorder %s92, %s94
      %p98 = scmp.eq.s32.totalorder %s16, 0
      %p99 = por %p97, %p98
      %p100 = scmp.ne.s32.totalorder %s92, %s94
      %p101 = scmp.eq.s32.totalorder %s21, 1
      %p102 = por %p100, %p101
      %p103 = scmp.ne.s32.totalorder %s94, %s95
      %p104 = scmp.eq.s32.totalorder %s21, 0
      %p105 = por %p103, %p104
      %p106 = scmp.ne.s32.totalorder %s94, %s95
      %p107 = scmp.eq.s32.totalorder %s22, 1
      %p108 = por %p106, %p107
      %p110 = scmp.ne.s32.totalorder %s95, %s109
      %p111 = scmp.eq.s32.totalorder %s22, 0
      %p112 = por %p110, %p111
      %s114 = sadd.s32 %s113, 1
      %p117 = scmp.eq.s32.totalorder %s16, 1
      %p118 = scmp.ne.s32.totalorder %s113, %s115
      %p119 = scmp.eq.s32.totalorder %s16, 0
      %p120 = por %p118, %p119
      %p121 = scmp.ne.s32.totalorder %s113, %s115
      %p122 = scmp.eq.s32.totalorder %s21, 1
      %p123 = por %p121, %p122
      %p124 = scmp.ne.s32.totalorder %s115, %s116
      %p125 = scmp.eq.s32.totalorder %s21, 0
      %p126 = por %p124, %p125
      %p127 = scmp.ne.s32.totalorder %s115, %s116
      %p128 = scmp.eq.s32.totalorder %s22, 1
      %p129 = por %p127, %p128
      %p131 = scmp.ne.s32.totalorder %s116, %s130
      %p132 = scmp.eq.s32.totalorder %s22, 0
      %p133 = por %p131, %p132
      %s135 = sadd.s32 %s134, 1
      %p138 = scmp.eq.s32.totalorder %s16, 1
      %p139 = scmp.ne.s32.totalorder %s134, %s136
      %p140 = scmp.eq.s32.totalorder %s16, 0
      %p141 = por %p139, %p140
      %p142 = scmp.ne.s32.totalorder %s134, %s136
      %p143 = scmp.eq.s32.totalorder %s21, 1
      %p144 = por %p142, %p143
      %p145 = scmp.ne.s32.totalorder %s136, %s137
      %p146 = scmp.eq.s32.totalorder %s21, 0
      %p147 = por %p145, %p146
      %p148 = scmp.ne.s32.totalorder %s136, %s137
      %p149 = scmp.eq.s32.totalorder %s22, 1
      %p150 = por %p148, %p149
      %p152 = scmp.ne.s32.totalorder %s137, %s151
      %p153 = scmp.eq.s32.totalorder %s22, 0
      %p154 = por %p152, %p153
      %s156 = sadd.s32 %s155, 1
      %p159 = scmp.eq.s32.totalorder %s16, 1
      %p160 = scmp.ne.s32.totalorder %s155, %s157
      %p161 = scmp.eq.s32.totalorder %s16, 0
      %p162 = por %p160, %p161
      %p163 = scmp.ne.s32.totalorder %s155, %s157
      %p164 = scmp.eq.s32.totalorder %s21, 1
      %p165 = por %p163, %p164
      %p166 = scmp.ne.s32.totalorder %s157, %s158
      %p167 = scmp.eq.s32.totalorder %s21, 0
      %p168 = por %p166, %p167
      %p169 = scmp.ne.s32.totalorder %s157, %s158
      %p170 = scmp.eq.s32.totalorder %s22, 1
      %p171 = por %p169, %p170
      %p173 = scmp.ne.s32.totalorder %s158, %s172
      %p174 = scmp.eq.s32.totalorder %s22, 0
      %p175 = por %p173, %p174
      %s176 = ssub.s32 %s16, %s23
      %p177 = scmp.eq.s32.totalorder %s176, 0
      %s179 = sadd.s32 %s178, 1
      %s180 = scalar_select %p177, %s178, %s179
      %p183 = pneg %p177
      %p184 = scmp.eq.s32.totalorder %s16, 1
      %p185 = por %p183, %p184
      %p186 = scmp.ne.s32.totalorder %s178, %s181
      %p187 = scmp.eq.s32.totalorder %s16, 0
      %p188 = por %p186, %p187
      %p189 = scmp.ne.s32.totalorder %s178, %s181
      %p190 = scmp.eq.s32.totalorder %s21, 1
      %p191 = por %p189, %p190
      %p192 = scmp.ne.s32.totalorder %s181, %s182
      %p193 = scmp.eq.s32.totalorder %s21, 0
      %p194 = por %p192, %p193
      %p195 = scmp.ne.s32.totalorder %s181, %s182
      %p196 = scmp.eq.s32.totalorder %s22, 1
      %p197 = por %p195, %p196
      %p199 = scmp.ne.s32.totalorder %s182, %s198
      %p200 = scmp.eq.s32.totalorder %s22, 0
      %p201 = por %p199, %p200
      %p202 = scmp.le.s32.totalorder 1, %s16
      %p203 = scmp.lt.s32.totalorder %s16, 3
      %p204 = pnand %p202, %p203
      %p205 = pneg %p204
      // Predicated region
      $region9: #{net2_forward.1} parent=5 // pred_check
        _
      $region10: #{net2_forward.1} parent=5 // pred_check_branch
        %207 = sbr.rel (%p204) target = $region12
      $region11: #{net2_forward.1} parent=5 // pred_region
        %s208 = ssub.s32 %s16, 1
        // Predicated region
        $region13: #{net2_forward.1} parent=11 // pred_check
          %p209 = pneg %p63
        $region14: #{net2_forward.1} parent=11 // pred_check_branch
          %211 = sbr.rel (%p209) target = $region16
        $region15: #{net2_forward.1} parent=11 // pred_region
          _
        $region16: #{net2_forward.1} parent=11 // pred_fallthru
          _
        // Predicated region
        $region17: #{net2_forward.1} parent=11 // pred_check
          %p212 = pneg %p84
        $region18: #{net2_forward.1} parent=11 // pred_check_branch
          %214 = sbr.rel (%p212) target = $region20
        $region19: #{net2_forward.1} parent=11 // pred_region
          _
        $region20: #{net2_forward.1} parent=11 // pred_fallthru
          _
        // Predicated region
        $region21: #{net2_forward.1} parent=11 // pred_check
          %p215 = pneg %p105
        $region22: #{net2_forward.1} parent=11 // pred_check_branch
          %217 = sbr.rel (%p215) target = $region24
        $region23: #{net2_forward.1} parent=11 // pred_region
          _
        $region24: #{net2_forward.1} parent=11 // pred_fallthru
          _
        // Predicated region
        $region25: #{net2_forward.1} parent=11 // pred_check
          %p218 = pneg %p126
        $region26: #{net2_forward.1} parent=11 // pred_check_branch
          %220 = sbr.rel (%p218) target = $region28
        $region27: #{net2_forward.1} parent=11 // pred_region
          _
        $region28: #{net2_forward.1} parent=11 // pred_fallthru
          _
        // Predicated region
        $region29: #{net2_forward.1} parent=11 // pred_check
          %p221 = pneg %p147
        $region30: #{net2_forward.1} parent=11 // pred_check_branch
          %223 = sbr.rel (%p221) target = $region32
        $region31: #{net2_forward.1} parent=11 // pred_region
          _
        $region32: #{net2_forward.1} parent=11 // pred_fallthru
          _
        // Predicated region
        $region33: #{net2_forward.1} parent=11 // pred_check
          %p224 = pneg %p168
        $region34: #{net2_forward.1} parent=11 // pred_check_branch
          %226 = sbr.rel (%p224) target = $region36
        $region35: #{net2_forward.1} parent=11 // pred_region
          _
        $region36: #{net2_forward.1} parent=11 // pred_fallthru
          _
      $region12: #{net2_forward.1} parent=5 // pred_fallthru
        _
      %p227 = scmp.lt.s32.totalorder %s16, 2
      // Predicated region
      $region37: #{net2_forward.1} parent=5 // pred_check
        %p228 = pneg %p227
      $region38: #{net2_forward.1} parent=5 // pred_check_branch
        %230 = sbr.rel (%p228) target = $region40
      $region39: #{net2_forward.1} parent=5 // pred_region
        // Predicated region
        $region41: #{net2_forward.1} parent=39 // pred_check
          %p231 = pneg %p36
        $region42: #{net2_forward.1} parent=39 // pred_check_branch
          %233 = sbr.rel (%p231) target = $region44
        $region43: #{net2_forward.1} parent=39 // pred_region
          %p234 = scmp.lt.s32.totalorder %s16, 1
          %s235 = scalar_select %p234, %s16, 1
          %s236 = smul.addr %s235, 2
          %s237 = smul.addr %s236, 8
          %s238 = scalar_lea.vmem %s0, %s237
        $region44: #{net2_forward.1} parent=39 // pred_fallthru
          _
      $region40: #{net2_forward.1} parent=5 // pred_fallthru
        _
      %p239 = scmp.le.s32.totalorder 1, %s16
      %p240 = scmp.lt.s32.totalorder %s16, 3
      %p241 = pnand %p239, %p240
      %p242 = pneg %p241
      // Predicated region
      $region45: #{net2_forward.1} parent=5 // pred_check
        _
      $region46: #{net2_forward.1} parent=5 // pred_check_branch
        %244 = sbr.rel (%p241) target = $region48
      $region47: #{net2_forward.1} parent=5 // pred_region
        %s245 = ssub.s32 %s16, 1
        %p246 = scmp.lt.s32.totalorder %s21, 1
        %s247 = scalar_select %p246, %s21, 1
        %s248 = smul.addr %s247, 2
        %s249 = smul.addr %s248, 8
        %s250 = scalar_lea.vmem %s0, %s249
        %p251 = pneg %p42
        %p252 = pneg %p39
        %p253 = pneg %p63
        %p254 = pneg %p60
        %p255 = pneg %p84
        %p256 = pneg %p81
        %p257 = pneg %p105
        %p258 = pneg %p102
        %p259 = pneg %p126
        %p260 = pneg %p123
        %p261 = pneg %p147
        %p262 = pneg %p144
        %p263 = pneg %p168
        %p264 = pneg %p165
        %p265 = pneg %p194
        %p266 = pneg %p191
        %s267 = sand.u32 %s181, 1
        %s268 = scalar_lea.sflag [#allocation3], %s267
        %s269 = sand.u32 %s181, 1
        %s270 = scalar_lea.vmem [#allocation2], %s269
        %p271 = scmp.lt.s32.totalorder %s21, 1
        %s272 = scalar_select %p271, %s21, 1
        %s273 = smul.addr %s272, 2
        %s274 = smul.addr %s273, 8
        %s275 = scalar_lea.vmem %s0, %s274
        %v276 = vld [vmem:[%s275] sm:$0xff]
        %v277 = vld [vmem:[%s275 + $0x8] sm:$0xff]
        %vm280 = vcmask 1046528
        %v281 = vrot.slane %v276, 1
        %v282 = vrot.slane %v277, 1
        %v283 = vsel %vm280, %v281, %v282
        %284 = vrot.lane.b32.xlu0 %v283, 16
        %v285 = vpop.permute.xlu0 %284
        %286 = vrot.lane.b32.xlu0 %v282, 16
        %v287 = vpop.permute.xlu0 %286
        %vm290 = vcmask 1045504
        %v291 = vrot.slane %v276, 2
        %v292 = vrot.slane %v277, 2
        %v293 = vsel %vm290, %v291, %v292
        %294 = vrot.lane.b32.xlu0 %v293, 32
        %v295 = vpop.permute.xlu0 %294
        %296 = vrot.lane.b32.xlu0 %v292, 32
        %v297 = vpop.permute.xlu0 %296
        %vm300 = vcmask 1044480
        %v301 = vrot.slane %v276, 3
        %v302 = vrot.slane %v277, 3
        %v303 = vsel %vm300, %v301, %v302
        %304 = vrot.lane.b32.xlu0 %v303, 48
        %v305 = vpop.permute.xlu0 %304
        %306 = vrot.lane.b32.xlu0 %v302, 48
        %v307 = vpop.permute.xlu0 %306
        %vm310 = vcmask 1043456
        %v311 = vrot.slane %v276, 4
        %v312 = vrot.slane %v277, 4
        %v313 = vsel %vm310, %v311, %v312
        %314 = vrot.lane.b32.xlu0 %v313, 64
        %v315 = vpop.permute.xlu0 %314
        %316 = vrot.lane.b32.xlu0 %v312, 64
        %v317 = vpop.permute.xlu0 %316
        %vm320 = vcmask 130048
        %v321 = vsel %vm320, %v276, %v285
        %v322 = vsel %vm320, %v277, %v287
        %vm323 = vcmask 261120
        %v324 = vsel %vm323, %v321, %v295
        %v325 = vsel %vm323, %v322, %v297
        %vm326 = vcmask 392192
        %v327 = vsel %vm326, %v324, %v305
        %v328 = vsel %vm326, %v325, %v307
        %vm329 = vcmask 523264
        %v330 = vsel %vm329, %v327, %v315
        %v331 = vsel %vm329, %v328, %v317
        %v332 = vld [vmem:[%s1] sm:$0xff]
        %v333 = vld [vmem:[%s1 + $0x8] sm:$0xff]
        %v334 = vld [vmem:[%s1 + $0x10] sm:$0xff]
        %v335 = vld [vmem:[%s1 + $0x18] sm:$0xff]
        %v336 = vld [vmem:[%s1 + $0x20] sm:$0xff]
        %v337 = vld [vmem:[%s1 + $0x28] sm:$0xff]
        %v338 = vld [vmem:[%s1 + $0x30] sm:$0xff]
        %v339 = vld [vmem:[%s1 + $0x38] sm:$0xff]
        %v340 = vld [vmem:[%s1 + $0x40] sm:$0xff]
        %v341 = vld [vmem:[%s1 + $0x48] sm:$0xff]
        %v342 = vld [vmem:[%s2] sm:$0x1]
        %v344 = vperm.slane %v342, 0
        %vm346 = vcmask 654336
        %v348 = vsel %vm346, %v330, 0
        %v351 = vsel %vm346, %v331, 0
        %353 = vmatpush.msra.mxu0 0.0
        %354 = vmatpush.msra.mxu0 0.0
        %355 = vmatpush.msra.mxu0 0.0
        %356 = vmatpush.msra.mxu0 0.0
        %357 = vmatpush.msra.mxu0 0.0
        %358 = vmatpush.msra.mxu0 0.0
        %359 = vmatpush.msra.mxu0 %v341
        %360 = vmatpush.msra.mxu0 %v340
        %361 = vmatpush.msra.mxu0 %v339
        %362 = vmatpush.msra.mxu0 %v338
        %363 = vmatpush.msra.mxu0 %v337
        %364 = vmatpush.msra.mxu0 %v336
        %365 = vmatpush.msra.mxu0 %v335
        %366 = vmatpush.msra.mxu0 %v334
        %367 = vmatpush.msra.mxu0 %v333
        %368 = vmatpush.msra.mxu0 %v332
        %369 = vmatmul.f32.gmra.mxu0 %v348
        %v370 = vpop.f32.mrf.mxu0
        %v371 = vadd.f32 %v344, %v370
        %372 = vmatmul.f32.gmra.mxu0 %v351
        %v373 = vpop.f32.mrf.mxu0
        %v374 = vadd.f32 %v344, %v373
        %375 = vdwg.mxu0
        %v376 = vsub.f32 0.0, %v371
        %v377 = vsub.f32 0.0, %v374
        %v378 = vmul.f32 %v376, 1.442695
        %v379 = vpow.pop %v378
        %v380 = vmul.f32 %v377, 1.442695
        %v381 = vpow.pop %v380
        %v382 = vadd.f32 %v379, 1.0
        %v383 = vadd.f32 %v381, 1.0
        %v384 = vrcp.pop %v382
        %v385 = vrcp.pop %v383
        %v386 = vld [vmem:[%s5] sm:$0xff]
        %v387 = vld [vmem:[%s5 + $0x8] sm:$0xff]
        %v388 = vld [vmem:[%s5 + $0x10] sm:$0xff]
        %v389 = vld [vmem:[%s5 + $0x18] sm:$0xff]
        %v390 = vld [vmem:[%s5 + $0x20] sm:$0xff]
        %v391 = vld [vmem:[%s5 + $0x28] sm:$0xff]
        %v392 = vld [vmem:[%s5 + $0x30] sm:$0xff]
        %v393 = vld [vmem:[%s5 + $0x38] sm:$0xff]
        %v394 = vld [vmem:[%s5 + $0x40] sm:$0xff]
        %s395 = scalar_lea.vmem %s5, 72
        %v396 = vld [vmem:[%s395] sm:$0xff]
        %v397 = vld [vmem:[%s395 + $0x8] sm:$0xff]
        %v398 = vld [vmem:[%s395 + $0x10] sm:$0xff]
        %v399 = vld [vmem:[%s395 + $0x18] sm:$0xff]
        %v400 = vld [vmem:[%s395 + $0x20] sm:$0xff]
        %v401 = vld [vmem:[%s395 + $0x28] sm:$0xff]
        %v402 = vld [vmem:[%s395 + $0x30] sm:$0xff]
        %v403 = vld [vmem:[%s395 + $0x38] sm:$0xff]
        %v404 = vld [vmem:[%s395 + $0x40] sm:$0xff]
        %v405 = vlaneseq
        %v406 = vshrl.u32 %v405, 7
        %v407 = vlaneseq
        %v408 = vand.u32 %v407, 127
        %v409 = vmul.u32 %v406, 2
        %vm410 = vcmp.eq.s32.totalorder %v408, %v409
        %v411 = vsel %vm410, 1, 0
        %v412 = vcvt.s32.f32 %v411
        %v413 = vadd.s32 %v409, 1
        %vm414 = vcmp.eq.s32.totalorder %v408, %v413
        %v415 = vsel %vm414, 1, 0
        %v416 = vcvt.s32.f32 %v415
        %vm417 = vcmask 97280
        %v419 = vsel %vm417, %v412, 0
        %v422 = vsel %vm310, %v385, 0
        %424 = vmatpush.msra.mxu0 0.0
        %425 = vmatpush.msra.mxu0 0.0
        %426 = vmatpush.msra.mxu0 0.0
        %427 = vmatpush.msra.mxu0 0.0
        %428 = vmatpush.msra.mxu0 0.0
        %429 = vmatpush.msra.mxu0 0.0
        %430 = vmatpush.msra.mxu0 0.0
        %431 = vmatpush.msra.mxu0 0.0
        %432 = vmatpush.msra.mxu0 0.0
        %433 = vmatpush.msra.mxu0 0.0
        %434 = vmatpush.msra.mxu0 0.0
        %435 = vmatpush.msra.mxu0 0.0
        %436 = vmatpush.msra.mxu0 0.0
        %437 = vmatpush.msra.mxu0 0.0
        %438 = vmatpush.msra.mxu0 %v422
        %439 = vmatpush.msra.mxu0 %v384
        %440 = vmatmul.f32.gmra.mxu0 %v419
        %v441 = vpop.f32.mrf.mxu0
        %v442 = vadd.f32 0.0, %v441
        %443 = vdwg.mxu0
        %v445 = vsel %vm417, %v416, 0
        %447 = vmatpush.msra.mxu0 0.0
        %448 = vmatpush.msra.mxu0 0.0
        %449 = vmatpush.msra.mxu0 0.0
        %450 = vmatpush.msra.mxu0 0.0
        %451 = vmatpush.msra.mxu0 0.0
        %452 = vmatpush.msra.mxu0 0.0
        %453 = vmatpush.msra.mxu0 0.0
        %454 = vmatpush.msra.mxu0 0.0
        %455 = vmatpush.msra.mxu0 0.0
        %456 = vmatpush.msra.mxu0 0.0
        %457 = vmatpush.msra.mxu0 0.0
        %458 = vmatpush.msra.mxu0 0.0
        %459 = vmatpush.msra.mxu0 0.0
        %460 = vmatpush.msra.mxu0 0.0
        %461 = vmatpush.msra.mxu0 %v422
        %462 = vmatpush.msra.mxu0 %v384
        %463 = vmatmul.f32.gmra.mxu0 %v445
        %v464 = vpop.f32.mrf.mxu0
        %v465 = vadd.f32 0.0, %v464
        %466 = vdwg.mxu0
        %v467 = vmax.f32 %v442, %v465
        %vm468 = vcmask 588800
        %v470 = vsel %vm468, %v467, 0
        %472 = vmatpush.msra.mxu0 0.0
        %473 = vmatpush.msra.mxu0 0.0
        %474 = vmatpush.msra.mxu0 0.0
        %475 = vmatpush.msra.mxu0 0.0
        %476 = vmatpush.msra.mxu0 0.0
        %477 = vmatpush.msra.mxu0 0.0
        %478 = vmatpush.msra.mxu0 0.0
        %479 = vmatpush.msra.mxu0 %v394
        %480 = vmatpush.msra.mxu0 %v393
        %481 = vmatpush.msra.mxu0 %v392
        %482 = vmatpush.msra.mxu0 %v391
        %483 = vmatpush.msra.mxu0 %v390
        %484 = vmatpush.msra.mxu0 %v389
        %485 = vmatpush.msra.mxu0 %v388
        %486 = vmatpush.msra.mxu0 %v387
        %487 = vmatpush.msra.mxu0 %v386
        %488 = vmatmul.f32.gmra.mxu0 %v470
        %v489 = vpop.f32.mrf.mxu0
        %v490 = vadd.f32 0.0, %v489
        %491 = vdwg.mxu0
        %492 = vmatpush.msra.mxu0 0.0
        %493 = vmatpush.msra.mxu0 0.0
        %494 = vmatpush.msra.mxu0 0.0
        %495 = vmatpush.msra.mxu0 0.0
        %496 = vmatpush.msra.mxu0 0.0
        %497 = vmatpush.msra.mxu0 0.0
        %498 = vmatpush.msra.mxu0 0.0
        %499 = vmatpush.msra.mxu0 %v404
        %500 = vmatpush.msra.mxu0 %v403
        %501 = vmatpush.msra.mxu0 %v402
        %502 = vmatpush.msra.mxu0 %v401
        %503 = vmatpush.msra.mxu0 %v400
        %504 = vmatpush.msra.mxu0 %v399
        %505 = vmatpush.msra.mxu0 %v398
        %506 = vmatpush.msra.mxu0 %v397
        %507 = vmatpush.msra.mxu0 %v396
        %508 = vmatmul.f32.gmra.mxu0 %v470
        %v509 = vpop.f32.mrf.mxu0
        %v510 = vadd.f32 0.0, %v509
        %511 = vdwg.mxu0
        %v512 = vmax.f32 %v490, %v510
        %v514 = vrot.slane %v512, 1
        %515 = vrot.lane.b32.xlu0 %v514, 36
        %v516 = vpop.permute.xlu0 %515
        %v518 = vrot.slane %v512, 2
        %519 = vrot.lane.b32.xlu0 %v518, 72
        %v520 = vpop.permute.xlu0 %519
        %v522 = vrot.slane %v512, 3
        %523 = vrot.lane.b32.xlu0 %v522, 108
        %v524 = vpop.permute.xlu0 %523
        %v526 = vrot.slane %v512, 4
        %527 = vrot.lane.b32.xlu0 %v526, 16
        %v528 = vpop.permute.xlu0 %527
        %vm530 = vcmask 293888
        %v531 = vsel %vm530, %v512, %v516
        %v532 = vsel %vm468, %v531, %v520
        %vm533 = vcmask 883712
        %v534 = vsel %vm533, %v532, %v524
        %v535 = vsel %vm320, %v524, %v528
        %v536 = vld [vmem:[%s3] sm:$0xff]
        %v537 = vld [vmem:[%s3 + $0x8] sm:$0xff]
        %v538 = vld [vmem:[%s3 + $0x10] sm:$0xff]
        %v539 = vld [vmem:[%s3 + $0x18] sm:$0xff]
        %v540 = vld [vmem:[%s3 + $0x20] sm:$0xff]
        %v541 = vld [vmem:[%s3 + $0x28] sm:$0xff]
        %v542 = vld [vmem:[%s3 + $0x30] sm:$0xff]
        %v543 = vld [vmem:[%s3 + $0x38] sm:$0xff]
        %v544 = vld [vmem:[%s3 + $0x40] sm:$0xff]
        %v545 = vld [vmem:[%s3 + $0x48] sm:$0xff]
        %v546 = vld [vmem:[%s3 + $0x50] sm:$0xff]
        %v547 = vld [vmem:[%s3 + $0x58] sm:$0xff]
        %v548 = vld [vmem:[%s3 + $0x60] sm:$0xff]
        %v549 = vld [vmem:[%s3 + $0x68] sm:$0xff]
        %v550 = vld [vmem:[%s3 + $0x70] sm:$0xff]
        %v551 = vld [vmem:[%s3 + $0x78] sm:$0xff]
        %v552 = vld [vmem:[%s3 + $0x80] sm:$0xff]
        %v553 = vld [vmem:[%s3 + $0x88] sm:$0xff]
        %v554 = vld [vmem:[%s3 + $0x90] sm:$0xff]
        %v555 = vld [vmem:[%s3 + $0x98] sm:$0xff]
        %v556 = vld [vmem:[%s3 + $0xa0] sm:$0xff]
        %v557 = vld [vmem:[%s3 + $0xa8] sm:$0xff]
        %v558 = vld [vmem:[%s3 + $0xb0] sm:$0xf]
        %v559 = vld [vmem:[%s4] sm:$0x1]
        %v561 = vperm.slane %v559, 0
        %vm563 = vcmask 424960
        %v565 = vsel %vm563, %v535, 0
        %v568 = vsel %vm310, %v558, 0
        %570 = vmatpush.msra.mxu0 %v551
        %571 = vmatpush.msra.mxu0 %v550
        %572 = vmatpush.msra.mxu0 %v549
        %573 = vmatpush.msra.mxu0 %v548
        %574 = vmatpush.msra.mxu0 %v547
        %575 = vmatpush.msra.mxu0 %v546
        %576 = vmatpush.msra.mxu0 %v545
        %577 = vmatpush.msra.mxu0 %v544
        %578 = vmatpush.msra.mxu0 %v543
        %579 = vmatpush.msra.mxu0 %v542
        %580 = vmatpush.msra.mxu0 %v541
        %581 = vmatpush.msra.mxu0 %v540
        %582 = vmatpush.msra.mxu0 %v539
        %583 = vmatpush.msra.mxu0 %v538
        %584 = vmatpush.msra.mxu0 %v537
        %585 = vmatpush.msra.mxu0 %v536
        %586 = vmatmul.f32.gmra.mxu0 %v534
        %v587 = vpop.f32.mrf.mxu0
        %v588 = vadd.f32 %v561, %v587
        %589 = vdwg.mxu0
        %590 = vmatpush.msra.mxu0 0.0
        %591 = vmatpush.msra.mxu0 0.0
        %592 = vmatpush.msra.mxu0 0.0
        %593 = vmatpush.msra.mxu0 0.0
        %594 = vmatpush.msra.mxu0 0.0
        %595 = vmatpush.msra.mxu0 0.0
        %596 = vmatpush.msra.mxu0 0.0
        %597 = vmatpush.msra.mxu0 0.0
        %598 = vmatpush.msra.mxu0 0.0
        %599 = vmatpush.msra.mxu0 %v568
        %600 = vmatpush.msra.mxu0 %v557
        %601 = vmatpush.msra.mxu0 %v556
        %602 = vmatpush.msra.mxu0 %v555
        %603 = vmatpush.msra.mxu0 %v554
        %604 = vmatpush.msra.mxu0 %v553
        %605 = vmatpush.msra.mxu0 %v552
        %606 = vmatmul.f32.gmra.mxu0 %v565
        %v607 = vpop.f32.mrf.mxu0
        %v608 = vadd.f32 %v588, %v607
        %609 = vdwg.mxu0
        %v610 = vmax.f32 %v608, 0.0
        %v611 = vld [vmem:[%s6] sm:$0xff]
        %v612 = vld [vmem:[%s6 + $0x8] sm:$0xff]
        %v613 = vld [vmem:[%s6 + $0x10] sm:$0xff]
        %v614 = vld [vmem:[%s6 + $0x18] sm:$0xff]
        %s615 = scalar_lea.vmem %s6, 32
        %v616 = vld [vmem:[%s615] sm:$0xff]
        %v617 = vld [vmem:[%s615 + $0x8] sm:$0xff]
        %v618 = vld [vmem:[%s615 + $0x10] sm:$0xff]
        %v619 = vld [vmem:[%s615 + $0x18] sm:$0xff]
        %vm620 = vcmask 15360
        %v621 = vsel %vm620, %v412, 0
        %vm623 = vcmask 1041408
        %v625 = vsel %vm623, %v610, 0
        %627 = vmatpush.msra.mxu0 0.0
        %628 = vmatpush.msra.mxu0 0.0
        %629 = vmatpush.msra.mxu0 0.0
        %630 = vmatpush.msra.mxu0 0.0
        %631 = vmatpush.msra.mxu0 0.0
        %632 = vmatpush.msra.mxu0 0.0
        %633 = vmatpush.msra.mxu0 0.0
        %634 = vmatpush.msra.mxu0 0.0
        %635 = vmatpush.msra.mxu0 0.0
        %636 = vmatpush.msra.mxu0 0.0
        %637 = vmatpush.msra.mxu0 0.0
        %638 = vmatpush.msra.mxu0 0.0
        %639 = vmatpush.msra.mxu0 0.0
        %640 = vmatpush.msra.mxu0 0.0
        %641 = vmatpush.msra.mxu0 0.0
        %642 = vmatpush.msra.mxu0 %v625
        %643 = vmatmul.f32.gmra.mxu0 %v621
        %v644 = vpop.f32.mrf.mxu0
        %v645 = vadd.f32 0.0, %v644
        %646 = vdwg.mxu0
        %v647 = vsel %vm620, %v416, 0
        %649 = vmatpush.msra.mxu0 0.0
        %650 = vmatpush.msra.mxu0 0.0
        %651 = vmatpush.msra.mxu0 0.0
        %652 = vmatpush.msra.mxu0 0.0
        %653 = vmatpush.msra.mxu0 0.0
        %654 = vmatpush.msra.mxu0 0.0
        %655 = vmatpush.msra.mxu0 0.0
        %656 = vmatpush.msra.mxu0 0.0
        %657 = vmatpush.msra.mxu0 0.0
        %658 = vmatpush.msra.mxu0 0.0
        %659 = vmatpush.msra.mxu0 0.0
        %660 = vmatpush.msra.mxu0 0.0
        %661 = vmatpush.msra.mxu0 0.0
        %662 = vmatpush.msra.mxu0 0.0
        %663 = vmatpush.msra.mxu0 0.0
        %664 = vmatpush.msra.mxu0 %v625
        %665 = vmatmul.f32.gmra.mxu0 %v647
        %v666 = vpop.f32.mrf.mxu0
        %v667 = vadd.f32 0.0, %v666
        %668 = vdwg.mxu0
        %v669 = vmax.f32 %v645, %v667
        %v671 = vsel %vm323, %v669, 0
        %673 = vmatpush.msra.mxu0 0.0
        %674 = vmatpush.msra.mxu0 0.0
        %675 = vmatpush.msra.mxu0 0.0
        %676 = vmatpush.msra.mxu0 0.0
        %677 = vmatpush.msra.mxu0 0.0
        %678 = vmatpush.msra.mxu0 0.0
        %679 = vmatpush.msra.mxu0 0.0
        %680 = vmatpush.msra.mxu0 0.0
        %681 = vmatpush.msra.mxu0 0.0
        %682 = vmatpush.msra.mxu0 0.0
        %683 = vmatpush.msra.mxu0 0.0
        %684 = vmatpush.msra.mxu0 0.0
        %685 = vmatpush.msra.mxu0 %v614
        %686 = vmatpush.msra.mxu0 %v613
        %687 = vmatpush.msra.mxu0 %v612
        %688 = vmatpush.msra.mxu0 %v611
        %689 = vmatmul.f32.gmra.mxu0 %v671
        %v690 = vpop.f32.mrf.mxu0
        %v691 = vadd.f32 0.0, %v690
        %692 = vdwg.mxu0
        %693 = vmatpush.msra.mxu0 0.0
        %694 = vmatpush.msra.mxu0 0.0
        %695 = vmatpush.msra.mxu0 0.0
        %696 = vmatpush.msra.mxu0 0.0
        %697 = vmatpush.msra.mxu0 0.0
        %698 = vmatpush.msra.mxu0 0.0
        %699 = vmatpush.msra.mxu0 0.0
        %700 = vmatpush.msra.mxu0 0.0
        %701 = vmatpush.msra.mxu0 0.0
        %702 = vmatpush.msra.mxu0 0.0
        %703 = vmatpush.msra.mxu0 0.0
        %704 = vmatpush.msra.mxu0 0.0
        %705 = vmatpush.msra.mxu0 %v619
        %706 = vmatpush.msra.mxu0 %v618
        %707 = vmatpush.msra.mxu0 %v617
        %708 = vmatpush.msra.mxu0 %v616
        %709 = vmatmul.f32.gmra.mxu0 %v671
        %v710 = vpop.f32.mrf.mxu0
        %v711 = vadd.f32 0.0, %v710
        %712 = vdwg.mxu0
        %v713 = vmax.f32 %v691, %v711
        %vm714 = vcmask 122880
        %715 = vst.msk [vmem:[%s270] sm:$0x1] %vm714, %v713
        %s716 = sand.u32 %s181, 1
        %s717 = scalar_lea.sflag [#allocation3], %s716
        %s718 = sand.u32 %s181, 1
        %s719 = scalar_lea.vmem [#allocation2], %s718
        // Predicated region
        $region49: #{net2_forward.1} parent=47 // pred_check
          %p720 = pneg %p191
        $region50: #{net2_forward.1} parent=47 // pred_check_branch
          %722 = sbr.rel (%p720) target = $region52
        $region51: #{net2_forward.1} parent=47 // pred_region
          %724 = vsyncadd %s717, 0
          %s725 = scalar_lea.hbm %s7, %s21
          %s727 = sshll.u32 %s719, 4
          %s728 = int_to_ptr.vmem [resolvable:$true] %s727
          %s729 = sshll.u32 %s725, 4
          %s730 = int_to_ptr.hbm [resolvable:$true] %s729
          %732 = dma.vmem_to_hbm [thread:$0]  %s728, 16, %s730, %s717
        $region52: #{net2_forward.1} parent=47 // pred_fallthru
          _
      $region48: #{net2_forward.1} parent=5 // pred_fallthru
        _
      %p733 = scmp.le.s32.totalorder 2, %s16
      // Predicated region
      $region53: #{net2_forward.1} parent=5 // pred_check
        %p734 = pneg %p733
      $region54: #{net2_forward.1} parent=5 // pred_check_branch
        %736 = sbr.rel (%p734) target = $region56
      $region55: #{net2_forward.1} parent=5 // pred_region
        %s737 = ssub.s32 %s16, 2
        // Predicated region
        $region57: #{net2_forward.1} parent=55 // pred_check
          %p738 = pneg %p197
        $region58: #{net2_forward.1} parent=55 // pred_check_branch
          %740 = sbr.rel (%p738) target = $region60
        $region59: #{net2_forward.1} parent=55 // pred_region
          %s741 = sand.u32 %s182, 1
          %s742 = scalar_lea.sflag [#allocation3], %s741
          %s743 = sand.u32 %s182, 1
          %s744 = scalar_lea.vmem [#allocation2], %s743
          %746 = dma.done %s742, 16
        $region60: #{net2_forward.1} parent=55 // pred_fallthru
          _
      $region56: #{net2_forward.1} parent=5 // pred_fallthru
        _
    $region6: #{net2_forward.1} parent=1 // loop_footer
      %s20 = sadd.s32 1, %s16
    $region7: #{net2_forward.1} parent=1 // loop_footer_branch
      %15 = sbr.rel target = $region3
    $region8: #{net2_forward.1} parent=1 // loop_exit
      _
    %747 = vsyncpa [#allocation3], 1
    %s748 = scalar_lea.sflag [#allocation3], 1
    %749 = vsyncpa %s748, 1

</llo_original>
